<compile_context>
chip_gen: v5e
topology: v5e:2x2
jax: 0.10.0
libtpu: 0.0.40
codegen_flags: <defaults>
</compile_context>

<pallas_src>
import functools

import jax
import jax.numpy as jnp
from jax.experimental import pallas as pl
from jax.experimental.pallas import tpu as pltpu

LANE = 128


def _round_up(x, m):
    return ((x + m - 1) // m) * m


# --------------------------------------------------------------------------
# Kernel
# --------------------------------------------------------------------------
def dueling_q_kernel(x_ref, w1_ref, b1_ref, w2_ref, b2_ref, wh_ref, bh_ref,
                     q_ref, *, n_actions):
    # fc1 + ReLU (f32 accumulation regardless of operand dtype)
    h1 = jnp.dot(x_ref[...], w1_ref[...],
                 preferred_element_type=jnp.float32) + b1_ref[...]
    h1 = jnp.maximum(h1, 0.0)

    # fc2 + ReLU
    h2 = jnp.dot(h1.astype(w2_ref.dtype), w2_ref[...],
                 preferred_element_type=jnp.float32) + b2_ref[...]
    h2 = jnp.maximum(h2, 0.0)

    # Fused heads: lanes [0, n_actions) = A, lane n_actions = V, rest == 0.
    heads = jnp.dot(h2.astype(wh_ref.dtype), wh_ref[...],
                    preferred_element_type=jnp.float32) + bh_ref[...]

    # Padded lanes are exactly zero, so row_sum = sum(A) + V  (XLU reduction).
    v = heads[:, n_actions:n_actions + 1]
    row_sum = jnp.sum(heads, axis=1, keepdims=True)
    a_mean = (row_sum - v) * (1.0 / float(n_actions))

    # Q = V + (A - mean(A)); write only the n_actions output lanes.
    q_ref[...] = (v + heads[:, :n_actions] - a_mean).astype(q_ref.dtype)


# --------------------------------------------------------------------------
# One-time parameter packing (hoisted out of the forward path)
# --------------------------------------------------------------------------
def prepare_kernel_params(params, *, compute_dtype=jnp.float32):
    """Pack/pad nn.Linear-style params for the kernel.  Call once.

    compute_dtype: jnp.float32 (exact) or jnp.bfloat16 (halves DMA/VMEM on
    v6e/v7x; accumulation stays f32 inside the kernel).
    """
    input_dim, fc1 = params["w1"].shape
    fc2 = params["w2"].shape[1]
    n_actions = params["wa"].shape[1]

    fc1_p = _round_up(fc1, LANE)
    fc2_p = _round_up(fc2, LANE)
    head_p = _round_up(n_actions + 1, LANE)

    cdt = compute_dtype
    w1p = jnp.zeros((input_dim, fc1_p), cdt).at[:, :fc1].set(
        params["w1"].astype(cdt))
    b1p = jnp.zeros((1, fc1_p), jnp.float32).at[:, :fc1].set(params["b1"])
    w2p = jnp.zeros((fc1_p, fc2_p), cdt).at[:fc1, :fc2].set(
        params["w2"].astype(cdt))
    b2p = jnp.zeros((1, fc2_p), jnp.float32).at[:, :fc2].set(params["b2"])

    # Fused, lane-padded head weight/bias: [A | V | zeros].
    whp = jnp.zeros((fc2_p, head_p), cdt)
    whp = whp.at[:fc2, :n_actions].set(params["wa"].astype(cdt))
    whp = whp.at[:fc2, n_actions:n_actions + 1].set(params["wv"].astype(cdt))
    bhp = jnp.zeros((1, head_p), jnp.float32)
    bhp = bhp.at[:, :n_actions].set(params["ba"])
    bhp = bhp.at[:, n_actions:n_actions + 1].set(params["bv"])

    return dict(w1=w1p, b1=b1p, w2=w2p, b2=b2p, wh=whp, bh=bhp,
                n_actions=n_actions, input_dim=input_dim,
                compute_dtype=cdt)


# --------------------------------------------------------------------------
# Forward
# --------------------------------------------------------------------------
def dueling_q_forward(state, kparams, *, tile_b=None, max_tile_b=4096):
    """state: (B, input_dim).  kparams: output of prepare_kernel_params."""
    B, input_dim = state.shape
    assert input_dim == kparams["input_dim"]
    n_actions = kparams["n_actions"]
    cdt = kparams["compute_dtype"]
    w1, b1, w2, b2, wh, bh = (kparams[k]
                              for k in ("w1", "b1", "w2", "b2", "wh", "bh"))
    fc1_p, fc2_p, head_p = w1.shape[1], w2.shape[1], wh.shape[1]

    # --- batch tile selection ------------------------------------------------
    if tile_b is None:
        # Big tiles amortize per-step overhead; even grid keeps both v7x TCs busy.
        n_tiles = max(1, pl.cdiv(B, max_tile_b))
        if n_tiles > 1 and n_tiles % 2:
            n_tiles += 1
        tile_b = _round_up(pl.cdiv(B, n_tiles), 8)
    else:
        tile_b = _round_up(min(int(tile_b), _round_up(B, 8)), 8)
    grid = (pl.cdiv(B, tile_b),)   # no jnp.pad: last partial block handled by Pallas

    x = state.astype(cdt)

    # --- scoped-VMEM budget (only matters for very large explicit tiles) -----
    itemsize = jnp.dtype(cdt).itemsize
    est = (2 * tile_b * input_dim * itemsize          # double-buffered x tiles
           + 2 * tile_b * n_actions * 4               # double-buffered Q tiles
           + 3 * tile_b * head_p * 4                  # h1/h2/heads intermediates
           + (w1.size + w2.size + wh.size) * itemsize
           + (b1.size + b2.size + bh.size) * 4)
    vmem_limit = None if est < (14 << 20) else int(min(2 * est, 56 << 20))

    kernel = functools.partial(dueling_q_kernel, n_actions=n_actions)

    q = pl.pallas_call(
        kernel,
        out_shape=jax.ShapeDtypeStruct((B, n_actions), jnp.float32),
        grid=grid,
        in_specs=[
            # batch-tiled activation input
            pl.BlockSpec((tile_b, input_dim), lambda i: (i, 0)),
            # weights / biases: whole array, VMEM-resident across grid steps
            pl.BlockSpec((input_dim, fc1_p), lambda i: (0, 0)),
            pl.BlockSpec((1, fc1_p), lambda i: (0, 0)),
            pl.BlockSpec((fc1_p, fc2_p), lambda i: (0, 0)),
            pl.BlockSpec((1, fc2_p), lambda i: (0, 0)),
            pl.BlockSpec((fc2_p, head_p), lambda i: (0, 0)),
            pl.BlockSpec((1, head_p), lambda i: (0, 0)),
        ],
        # narrow output: last dim == full array dim, so (8,128) rule is met
        out_specs=pl.BlockSpec((tile_b, n_actions), lambda i: (i, 0)),
        compiler_params=pltpu.CompilerParams(
            dimension_semantics=("parallel",),
            vmem_limit_bytes=vmem_limit),
    )(x, w1, b1, w2, b2, wh, bh)

    return q


# --------------------------------------------------------------------------
# Init + pure-JAX reference
# --------------------------------------------------------------------------
def init_params(key, input_dim, fc1_dims, fc2_dims, n_actions):
    """PyTorch-Linear-style uniform fan-in init, weights stored as (in, out)."""
    ks = jax.random.split(key, 8)

    def lin(kw, kb, fan_in, fan_out):
        bound = 1.0 / jnp.sqrt(fan_in)
        w = jax.random.uniform(kw, (fan_in, fan_out), jnp.float32, -bound, bound)
        b = jax.random.uniform(kb, (1, fan_out), jnp.float32, -bound, bound)
        return w, b

    w1, b1 = lin(ks[0], ks[1], input_dim, fc1_dims)
    w2, b2 = lin(ks[2], ks[3], fc1_dims, fc2_dims)
    wv, bv = lin(ks[4], ks[5], fc2_dims, 1)
    wa, ba = lin(ks[6], ks[7], fc2_dims, n_actions)
    return dict(w1=w1, b1=b1, w2=w2, b2=b2, wv=wv, bv=bv, wa=wa, ba=ba)


def reference_forward(state, p):
    h1 = jnp.maximum(state @ p["w1"] + p["b1"], 0.0)
    h2 = jnp.maximum(h1 @ p["w2"] + p["b2"], 0.0)
    V = h2 @ p["wv"] + p["bv"]
    A = h2 @ p["wa"] + p["ba"]
    return V + (A - jnp.mean(A, axis=1, keepdims=True))


if __name__ == "__main__":
    # Small shapes consistent with the module: input_dim=16, fc1=32, fc2=32,
    # n_actions=4.  B=200 with tile_b=64 exercises a 4-step grid (even -> both
    # v7x TCs) including a partial last block (no input pad).  Production use:
    # leave tile_b=None and the wrapper picks 1024-4096 row tiles.
    B, INPUT_DIM, FC1, FC2, N_ACTIONS = 200, 16, 32, 32, 4

    key = jax.random.PRNGKey(0)
    k_params, k_state = jax.random.split(key)

    params = init_params(k_params, INPUT_DIM, FC1, FC2, N_ACTIONS)
    kparams = prepare_kernel_params(params)          # one-time packing
    state = jax.random.normal(k_state, (B, INPUT_DIM), jnp.float32)

    q_ref = reference_forward(state, params)

    # multi-step grid with a partial trailing block
    q_tiled = jax.block_until_ready(dueling_q_forward(state, kparams, tile_b=64))
    # auto tile selection (single large tile here)
    q_auto = jax.block_until_ready(dueling_q_forward(state, kparams))

    assert q_tiled.shape == (B, N_ACTIONS)
    assert jnp.allclose(q_tiled, q_ref, atol=1e-5, rtol=1e-5), \
        "Pallas kernel (tiled grid) mismatch vs JAX reference"
    assert jnp.allclose(q_auto, q_ref, atol=1e-5, rtol=1e-5), \
        "Pallas kernel (auto tile) mismatch vs JAX reference"

    print("KERNEL_OK")
</pallas_src>

<mosaic_0001>
module attributes {stable_mosaic.version = 11 : i64} {
  func.func @dueling_q_kernel(%arg0: i32, %arg1: memref<64x16xf32, #tpu.memory_space<vmem>>, %arg2: memref<16x128xf32, #tpu.memory_space<vmem>>, %arg3: memref<1x128xf32, #tpu.memory_space<vmem>>, %arg4: memref<128x128xf32, #tpu.memory_space<vmem>>, %arg5: memref<1x128xf32, #tpu.memory_space<vmem>>, %arg6: memref<128x128xf32, #tpu.memory_space<vmem>>, %arg7: memref<1x128xf32, #tpu.memory_space<vmem>>, %arg8: memref<64x4xf32, #tpu.memory_space<vmem>>) attributes {dimension_semantics = [#tpu.dimension_semantics<parallel>], iteration_bounds = array<i64: 4>, scalar_prefetch = 0 : i64, scratch_operands = 0 : i64, tpu.core_type = #tpu.core_type<tc>, window_params = [{transform_indices = @transform_0, window_bounds = array<i64: 64, 16>}, {pipeline_mode = #tpu.pipeline_mode<synchronous>, transform_indices = @transform_1, window_bounds = array<i64: 16, 128>}, {pipeline_mode = #tpu.pipeline_mode<synchronous>, transform_indices = @transform_2, window_bounds = array<i64: 1, 128>}, {pipeline_mode = #tpu.pipeline_mode<synchronous>, transform_indices = @transform_3, window_bounds = array<i64: 128, 128>}, {pipeline_mode = #tpu.pipeline_mode<synchronous>, transform_indices = @transform_4, window_bounds = array<i64: 1, 128>}, {pipeline_mode = #tpu.pipeline_mode<synchronous>, transform_indices = @transform_5, window_bounds = array<i64: 128, 128>}, {pipeline_mode = #tpu.pipeline_mode<synchronous>, transform_indices = @transform_6, window_bounds = array<i64: 1, 128>}, {transform_indices = @transform_7, window_bounds = array<i64: 64, 4>}]} {
    %c0 = arith.constant 0 : index
    %c0_0 = arith.constant 0 : index
    %0 = vector.load %arg1[%c0, %c0_0] : memref<64x16xf32, #tpu.memory_space<vmem>>, vector<64x16xf32>
    %c0_1 = arith.constant 0 : index
    %c0_2 = arith.constant 0 : index
    %1 = vector.load %arg2[%c0_1, %c0_2] : memref<16x128xf32, #tpu.memory_space<vmem>>, vector<16x128xf32>
    %cst = arith.constant dense<0.000000e+00> : vector<64x128xf32>
    %2 = tpu.matmul %0, %1, %cst {dimension_numbers = #tpu.dot_dimension_numbers<[1], [0], [0], [1], [0, 0, 1, 1], [], []>} : vector<64x16xf32>, vector<16x128xf32>, vector<64x128xf32> -> vector<64x128xf32>
    %c0_3 = arith.constant 0 : index
    %c0_4 = arith.constant 0 : index
    %3 = vector.load %arg3[%c0_3, %c0_4] : memref<1x128xf32, #tpu.memory_space<vmem>>, vector<1x128xf32>
    %4 = vector.broadcast %3 : vector<1x128xf32> to vector<64x128xf32>
    %5 = arith.addf %2, %4 : vector<64x128xf32>
    %cst_5 = arith.constant 0.000000e+00 : f32
    %6 = vector.broadcast %cst_5 : f32 to vector<64x128xf32>
    %7 = arith.maximumf %5, %6 : vector<64x128xf32>
    %c0_6 = arith.constant 0 : index
    %c0_7 = arith.constant 0 : index
    %8 = vector.load %arg4[%c0_6, %c0_7] : memref<128x128xf32, #tpu.memory_space<vmem>>, vector<128x128xf32>
    %cst_8 = arith.constant dense<0.000000e+00> : vector<64x128xf32>
    %9 = tpu.matmul %7, %8, %cst_8 {dimension_numbers = #tpu.dot_dimension_numbers<[1], [0], [0], [1], [0, 0, 1, 1], [], []>} : vector<64x128xf32>, vector<128x128xf32>, vector<64x128xf32> -> vector<64x128xf32>
    %c0_9 = arith.constant 0 : index
    %c0_10 = arith.constant 0 : index
    %10 = vector.load %arg5[%c0_9, %c0_10] : memref<1x128xf32, #tpu.memory_space<vmem>>, vector<1x128xf32>
    %11 = vector.broadcast %10 : vector<1x128xf32> to vector<64x128xf32>
    %12 = arith.addf %9, %11 : vector<64x128xf32>
    %cst_11 = arith.constant 0.000000e+00 : f32
    %13 = vector.broadcast %cst_11 : f32 to vector<64x128xf32>
    %14 = arith.maximumf %12, %13 : vector<64x128xf32>
    %c0_12 = arith.constant 0 : index
    %c0_13 = arith.constant 0 : index
    %15 = vector.load %arg6[%c0_12, %c0_13] : memref<128x128xf32, #tpu.memory_space<vmem>>, vector<128x128xf32>
    %cst_14 = arith.constant dense<0.000000e+00> : vector<64x128xf32>
    %16 = tpu.matmul %14, %15, %cst_14 {dimension_numbers = #tpu.dot_dimension_numbers<[1], [0], [0], [1], [0, 0, 1, 1], [], []>} : vector<64x128xf32>, vector<128x128xf32>, vector<64x128xf32> -> vector<64x128xf32>
    %c0_15 = arith.constant 0 : index
    %c0_16 = arith.constant 0 : index
    %17 = vector.load %arg7[%c0_15, %c0_16] : memref<1x128xf32, #tpu.memory_space<vmem>>, vector<1x128xf32>
    %18 = vector.broadcast %17 : vector<1x128xf32> to vector<64x128xf32>
    %19 = arith.addf %16, %18 : vector<64x128xf32>
    %20 = vector.extract_strided_slice %19 {offsets = [0, 4], sizes = [64, 1], strides = [1, 1]} : vector<64x128xf32> to vector<64x1xf32>
    %cst_17 = arith.constant dense<0.000000e+00> : vector<64xf32>
    %21 = vector.multi_reduction <add>, %19, %cst_17 [1] : vector<64x128xf32> to vector<64xf32>
    %22 = vector.shape_cast %21 : vector<64xf32> to vector<64x1xf32>
    %23 = arith.subf %22, %20 : vector<64x1xf32>
    %cst_18 = arith.constant 2.500000e-01 : f32
    %24 = vector.broadcast %cst_18 : f32 to vector<64x1xf32>
    %25 = arith.mulf %23, %24 : vector<64x1xf32>
    %26 = vector.extract_strided_slice %19 {offsets = [0, 0], sizes = [64, 4], strides = [1, 1]} : vector<64x128xf32> to vector<64x4xf32>
    %27 = vector.broadcast %20 : vector<64x1xf32> to vector<64x4xf32>
    %28 = arith.addf %27, %26 : vector<64x4xf32>
    %29 = vector.broadcast %25 : vector<64x1xf32> to vector<64x4xf32>
    %30 = arith.subf %28, %29 : vector<64x4xf32>
    %c0_19 = arith.constant 0 : index
    %c0_20 = arith.constant 0 : index
    %31 = vector.load %arg8[%c0_19, %c0_20] : memref<64x4xf32, #tpu.memory_space<vmem>>, vector<64x4xf32>
    tpu.vector_store %arg8[%c0_19, %c0_20], %30 {strides = array<i32>} : memref<64x4xf32, #tpu.memory_space<vmem>>, vector<64x4xf32>,
    return
  }
  func.func @transform_0(%arg0: i32) -> (i32, i32) {
    %c0_i32 = arith.constant 0 : i32
    %c0_i32_0 = arith.constant 0 : i32
    return %arg0, %c0_i32 : i32, i32
  }
  func.func @transform_1(%arg0: i32) -> (i32, i32) {
    %c0_i32 = arith.constant 0 : i32
    %c0_i32_0 = arith.constant 0 : i32
    %c0_i32_1 = arith.constant 0 : i32
    return %c0_i32, %c0_i32_0 : i32, i32
  }
  func.func @transform_2(%arg0: i32) -> (i32, i32) {
    %c0_i32 = arith.constant 0 : i32
    %c0_i32_0 = arith.constant 0 : i32
    %c0_i32_1 = arith.constant 0 : i32
    return %c0_i32, %c0_i32_0 : i32, i32
  }
  func.func @transform_3(%arg0: i32) -> (i32, i32) {
    %c0_i32 = arith.constant 0 : i32
    %c0_i32_0 = arith.constant 0 : i32
    %c0_i32_1 = arith.constant 0 : i32
    return %c0_i32, %c0_i32_0 : i32, i32
  }
  func.func @transform_4(%arg0: i32) -> (i32, i32) {
    %c0_i32 = arith.constant 0 : i32
    %c0_i32_0 = arith.constant 0 : i32
    %c0_i32_1 = arith.constant 0 : i32
    return %c0_i32, %c0_i32_0 : i32, i32
  }
  func.func @transform_5(%arg0: i32) -> (i32, i32) {
    %c0_i32 = arith.constant 0 : i32
    %c0_i32_0 = arith.constant 0 : i32
    %c0_i32_1 = arith.constant 0 : i32
    return %c0_i32, %c0_i32_0 : i32, i32
  }
  func.func @transform_6(%arg0: i32) -> (i32, i32) {
    %c0_i32 = arith.constant 0 : i32
    %c0_i32_0 = arith.constant 0 : i32
    %c0_i32_1 = arith.constant 0 : i32
    return %c0_i32, %c0_i32_0 : i32, i32
  }
  func.func @transform_7(%arg0: i32) -> (i32, i32) {
    %c0_i32 = arith.constant 0 : i32
    %c0_i32_0 = arith.constant 0 : i32
    return %arg0, %c0_i32 : i32, i32
  }
}

</mosaic_0001>

<llo_original>
// kernel: tpu_custom_call.1
$region0: #{tpu_custom_call.1}
  #allocation0 [shape = 'u32[]', space=smem, size = 0x4, offset = 0x4, fixed_abs, tag = 'smem constant byte address 0x4 - core index']
  #allocation1 [shape = 'u32[72,128]{1,0:T(1,128)}', space=vmem, size = 0x9000, scoped, tag = 'internal scratch']
  %s0 = inlined_call_operand.vmem [shape: f32[200,16], index: 0, kind: input, shape index: {}]
  %s1 = inlined_call_operand.vmem [shape: f32[16,128], index: 1, kind: input, shape index: {}]
  %s2 = inlined_call_operand.vmem [shape: f32[1,128], index: 2, kind: input, shape index: {}]
  %s3 = inlined_call_operand.vmem [shape: f32[128,128], index: 3, kind: input, shape index: {}]
  %s4 = inlined_call_operand.vmem [shape: f32[1,128], index: 4, kind: input, shape index: {}]
  %s5 = inlined_call_operand.hbm [shape: f32[128,128], index: 5, kind: input, shape index: {}]
  %s6 = inlined_call_operand.vmem [shape: f32[1,128], index: 6, kind: input, shape index: {}]
  %s7 = inlined_call_operand.vmem [shape: f32[200,4], index: 7, kind: output, shape index: {}]
  %s8 = sld [smem:[#allocation0]]
  $region113: #{tpu_custom_call.1} parent=0
    _
  %s10 = ssub.s32 1, %s8
  %s11 = scalar_select 0, %s10, %s8
  $region1: #{tpu_custom_call.1} parent=0
    #allocation2 [shape = 'u8[65536]{0}', space=vmem, size = 0x10000, scoped, tag = 'input window, operand 5, single buffered']
    #allocation3 [shape = 's32[2]{0}', space=sflag, size = 0x8, scoped, tag = 'scoped memory for tpu_custom_call.1']
    #allocation4 [shape = 'u8[65536]{0}', space=vmem, size = 0x10000, scoped, tag = 'output window, operand 0']
    %12 = vsyncpa [#allocation3], 0
    loop: start=0, step=1, limit=6
    $region2: #{tpu_custom_call.1} parent=1 // loop_pre_header
      _
    $region3: #{tpu_custom_call.1} parent=1 // loop_header
      %s14 = sphi 0, %s18
      %p15 = scmp.ge.s32.totalorder %s14, 6
      %s24 = sphi 0, %s26
      %s27 = sphi 0, %s24
      %s28 = sphi 0, %s27
      %s44 = sphi 0, %s28
      %s48 = sphi 0, %s48
      %s50 = sphi 0, %s48
      %s51 = sphi 0, %s50
      %s65 = sphi 0, %s51
      %s69 = sphi 0, %s69
      %s71 = sphi 0, %s69
      %s72 = sphi 0, %s71
      %s86 = sphi 0, %s72
      %s90 = sphi 0, %s90
      %s92 = sphi 0, %s90
      %s93 = sphi 0, %s92
      %s107 = sphi 0, %s93
      %s111 = sphi 0, %s111
      %s113 = sphi 0, %s111
      %s114 = sphi 0, %s113
      %s128 = sphi 0, %s114
      %s132 = sphi 0, %s132
      %s134 = sphi 0, %s132
      %s135 = sphi 0, %s134
      %s149 = sphi 0, %s135
      %s153 = sphi 0, %s153
      %s155 = sphi 0, %s153
      %s156 = sphi 0, %s155
      %s170 = sphi 0, %s156
      %s176 = sphi 0, %s178
      %s179 = sphi 0, %s176
      %s180 = sphi 0, %s179
      %s196 = sphi 0, %s180
    $region4: #{tpu_custom_call.1} parent=1 // loop_header_branch
      %17 = sbr.rel (%p15) target = $region8
    $region5: #{tpu_custom_call.1} parent=1 // loop_body
      %s19 = ssub.s32 %s14, 1
      %s20 = ssub.s32 %s14, 2
      %s21 = sadd.s32 %s14, 1
      %s22 = ssub.s32 %s14, %s21
      %p23 = scmp.eq.s32.totalorder %s22, 0
      %s25 = sadd.s32 %s24, 1
      %s26 = scalar_select %p23, %s24, %s25
      %p29 = pneg %p23
      %p30 = scmp.eq.s32.totalorder %s14, 3
      %p31 = por %p29, %p30
      %p32 = scmp.ne.s32.totalorder %s24, %s27
      %p33 = scmp.eq.s32.totalorder %s14, 0
      %p34 = por %p32, %p33
      %p35 = scmp.ne.s32.totalorder %s24, %s27
      %p36 = scmp.eq.s32.totalorder %s19, 3
      %p37 = por %p35, %p36
      %p38 = scmp.ne.s32.totalorder %s27, %s28
      %p39 = scmp.eq.s32.totalorder %s19, 0
      %p40 = por %p38, %p39
      %p41 = scmp.ne.s32.totalorder %s27, %s28
      %p42 = scmp.eq.s32.totalorder %s20, 3
      %p43 = por %p41, %p42
      %p45 = scmp.ne.s32.totalorder %s28, %s44
      %p46 = scmp.eq.s32.totalorder %s20, 0
      %p47 = por %p45, %p46
      %s49 = sadd.s32 %s48, 1
      %p52 = scmp.eq.s32.totalorder %s14, 3
      %p53 = scmp.ne.s32.totalorder %s48, %s50
      %p54 = scmp.eq.s32.totalorder %s14, 0
      %p55 = por %p53, %p54
      %p56 = scmp.ne.s32.totalorder %s48, %s50
      %p57 = scmp.eq.s32.totalorder %s19, 3
      %p58 = por %p56, %p57
      %p59 = scmp.ne.s32.totalorder %s50, %s51
      %p60 = scmp.eq.s32.totalorder %s19, 0
      %p61 = por %p59, %p60
      %p62 = scmp.ne.s32.totalorder %s50, %s51
      %p63 = scmp.eq.s32.totalorder %s20, 3
      %p64 = por %p62, %p63
      %p66 = scmp.ne.s32.totalorder %s51, %s65
      %p67 = scmp.eq.s32.totalorder %s20, 0
      %p68 = por %p66, %p67
      %s70 = sadd.s32 %s69, 1
      %p73 = scmp.eq.s32.totalorder %s14, 3
      %p74 = scmp.ne.s32.totalorder %s69, %s71
      %p75 = scmp.eq.s32.totalorder %s14, 0
      %p76 = por %p74, %p75
      %p77 = scmp.ne.s32.totalorder %s69, %s71
      %p78 = scmp.eq.s32.totalorder %s19, 3
      %p79 = por %p77, %p78
      %p80 = scmp.ne.s32.totalorder %s71, %s72
      %p81 = scmp.eq.s32.totalorder %s19, 0
      %p82 = por %p80, %p81
      %p83 = scmp.ne.s32.totalorder %s71, %s72
      %p84 = scmp.eq.s32.totalorder %s20, 3
      %p85 = por %p83, %p84
      %p87 = scmp.ne.s32.totalorder %s72, %s86
      %p88 = scmp.eq.s32.totalorder %s20, 0
      %p89 = por %p87, %p88
      %s91 = sadd.s32 %s90, 1
      %p94 = scmp.eq.s32.totalorder %s14, 3
      %p95 = scmp.ne.s32.totalorder %s90, %s92
      %p96 = scmp.eq.s32.totalorder %s14, 0
      %p97 = por %p95, %p96
      %p98 = scmp.ne.s32.totalorder %s90, %s92
      %p99 = scmp.eq.s32.totalorder %s19, 3
      %p100 = por %p98, %p99
      %p101 = scmp.ne.s32.totalorder %s92, %s93
      %p102 = scmp.eq.s32.totalorder %s19, 0
      %p103 = por %p101, %p102
      %p104 = scmp.ne.s32.totalorder %s92, %s93
      %p105 = scmp.eq.s32.totalorder %s20, 3
      %p106 = por %p104, %p105
      %p108 = scmp.ne.s32.totalorder %s93, %s107
      %p109 = scmp.eq.s32.totalorder %s20, 0
      %p110 = por %p108, %p109
      %s112 = sadd.s32 %s111, 1
      %p115 = scmp.eq.s32.totalorder %s14, 3
      %p116 = scmp.ne.s32.totalorder %s111, %s113
      %p117 = scmp.eq.s32.totalorder %s14, 0
      %p118 = por %p116, %p117
      %p119 = scmp.ne.s32.totalorder %s111, %s113
      %p120 = scmp.eq.s32.totalorder %s19, 3
      %p121 = por %p119, %p120
      %p122 = scmp.ne.s32.totalorder %s113, %s114
      %p123 = scmp.eq.s32.totalorder %s19, 0
      %p124 = por %p122, %p123
      %p125 = scmp.ne.s32.totalorder %s113, %s114
      %p126 = scmp.eq.s32.totalorder %s20, 3
      %p127 = por %p125, %p126
      %p129 = scmp.ne.s32.totalorder %s114, %s128
      %p130 = scmp.eq.s32.totalorder %s20, 0
      %p131 = por %p129, %p130
      %s133 = sadd.s32 %s132, 1
      %p136 = scmp.eq.s32.totalorder %s14, 3
      %p137 = scmp.ne.s32.totalorder %s132, %s134
      %p138 = scmp.eq.s32.totalorder %s14, 0
      %p139 = por %p137, %p138
      %p140 = scmp.ne.s32.totalorder %s132, %s134
      %p141 = scmp.eq.s32.totalorder %s19, 3
      %p142 = por %p140, %p141
      %p143 = scmp.ne.s32.totalorder %s134, %s135
      %p144 = scmp.eq.s32.totalorder %s19, 0
      %p145 = por %p143, %p144
      %p146 = scmp.ne.s32.totalorder %s134, %s135
      %p147 = scmp.eq.s32.totalorder %s20, 3
      %p148 = por %p146, %p147
      %p150 = scmp.ne.s32.totalorder %s135, %s149
      %p151 = scmp.eq.s32.totalorder %s20, 0
      %p152 = por %p150, %p151
      %s154 = sadd.s32 %s153, 1
      %p157 = scmp.eq.s32.totalorder %s14, 3
      %p158 = scmp.ne.s32.totalorder %s153, %s155
      %p159 = scmp.eq.s32.totalorder %s14, 0
      %p160 = por %p158, %p159
      %p161 = scmp.ne.s32.totalorder %s153, %s155
      %p162 = scmp.eq.s32.totalorder %s19, 3
      %p163 = por %p161, %p162
      %p164 = scmp.ne.s32.totalorder %s155, %s156
      %p165 = scmp.eq.s32.totalorder %s19, 0
      %p166 = por %p164, %p165
      %p167 = scmp.ne.s32.totalorder %s155, %s156
      %p168 = scmp.eq.s32.totalorder %s20, 3
      %p169 = por %p167, %p168
      %p171 = scmp.ne.s32.totalorder %s156, %s170
      %p172 = scmp.eq.s32.totalorder %s20, 0
      %p173 = por %p171, %p172
      %s174 = ssub.s32 %s14, %s21
      %p175 = scmp.eq.s32.totalorder %s174, 0
      %s177 = sadd.s32 %s176, 1
      %s178 = scalar_select %p175, %s176, %s177
      %p181 = pneg %p175
      %p182 = scmp.eq.s32.totalorder %s14, 3
      %p183 = por %p181, %p182
      %p184 = scmp.ne.s32.totalorder %s176, %s179
      %p185 = scmp.eq.s32.totalorder %s14, 0
      %p186 = por %p184, %p185
      %p187 = scmp.ne.s32.totalorder %s176, %s179
      %p188 = scmp.eq.s32.totalorder %s19, 3
      %p189 = por %p187, %p188
      %p190 = scmp.ne.s32.totalorder %s179, %s180
      %p191 = scmp.eq.s32.totalorder %s19, 0
      %p192 = por %p190, %p191
      %p193 = scmp.ne.s32.totalorder %s179, %s180
      %p194 = scmp.eq.s32.totalorder %s20, 3
      %p195 = por %p193, %p194
      %p197 = scmp.ne.s32.totalorder %s180, %s196
      %p198 = scmp.eq.s32.totalorder %s20, 0
      %p199 = por %p197, %p198
      %p200 = scmp.le.s32.totalorder 1, %s14
      %p201 = scmp.lt.s32.totalorder %s14, 5
      %p202 = pnand %p200, %p201
      %p203 = pneg %p202
      // Predicated region
      $region9: #{tpu_custom_call.1} parent=5 // pred_check
        _
      $region10: #{tpu_custom_call.1} parent=5 // pred_check_branch
        %205 = sbr.rel (%p202) target = $region12
      $region11: #{tpu_custom_call.1} parent=5 // pred_region
        %s206 = ssub.s32 %s14, 1
        // Predicated region
        $region13: #{tpu_custom_call.1} parent=11 // pred_check
          %p207 = pneg %p61
        $region14: #{tpu_custom_call.1} parent=11 // pred_check_branch
          %209 = sbr.rel (%p207) target = $region16
        $region15: #{tpu_custom_call.1} parent=11 // pred_region
          _
        $region16: #{tpu_custom_call.1} parent=11 // pred_fallthru
          _
        // Predicated region
        $region17: #{tpu_custom_call.1} parent=11 // pred_check
          %p210 = pneg %p82
        $region18: #{tpu_custom_call.1} parent=11 // pred_check_branch
          %212 = sbr.rel (%p210) target = $region20
        $region19: #{tpu_custom_call.1} parent=11 // pred_region
          _
        $region20: #{tpu_custom_call.1} parent=11 // pred_fallthru
          _
        // Predicated region
        $region21: #{tpu_custom_call.1} parent=11 // pred_check
          %p213 = pneg %p103
        $region22: #{tpu_custom_call.1} parent=11 // pred_check_branch
          %215 = sbr.rel (%p213) target = $region24
        $region23: #{tpu_custom_call.1} parent=11 // pred_region
          _
        $region24: #{tpu_custom_call.1} parent=11 // pred_fallthru
          _
        // Predicated region
        $region25: #{tpu_custom_call.1} parent=11 // pred_check
          %p216 = pneg %p124
        $region26: #{tpu_custom_call.1} parent=11 // pred_check_branch
          %218 = sbr.rel (%p216) target = $region28
        $region27: #{tpu_custom_call.1} parent=11 // pred_region
          _
        $region28: #{tpu_custom_call.1} parent=11 // pred_fallthru
          _
        // Predicated region
        $region29: #{tpu_custom_call.1} parent=11 // pred_check
          %p219 = pneg %p145
        $region30: #{tpu_custom_call.1} parent=11 // pred_check_branch
          %221 = sbr.rel (%p219) target = $region32
        $region31: #{tpu_custom_call.1} parent=11 // pred_region
          %223 = vsyncadd [#allocation3], 0
          %s224 = sshll.u32 %s5, 4
          %s225 = int_to_ptr.hbm [resolvable:$true] %s224
          %s226 = sshll.u32 [#allocation2], 4
          %s227 = int_to_ptr.vmem [resolvable:$true] %s226
          %232 = dma.hbm_to_vmem [thread:$0]  %s225, 2048, %s227, [#allocation3], 128, 128, 8
        $region32: #{tpu_custom_call.1} parent=11 // pred_fallthru
          _
        // Predicated region
        $region33: #{tpu_custom_call.1} parent=11 // pred_check
          %p233 = pneg %p166
        $region34: #{tpu_custom_call.1} parent=11 // pred_check_branch
          %235 = sbr.rel (%p233) target = $region36
        $region35: #{tpu_custom_call.1} parent=11 // pred_region
          _
        $region36: #{tpu_custom_call.1} parent=11 // pred_fallthru
          _
      $region12: #{tpu_custom_call.1} parent=5 // pred_fallthru
        _
      %p236 = scmp.lt.s32.totalorder %s14, 4
      // Predicated region
      $region37: #{tpu_custom_call.1} parent=5 // pred_check
        %p237 = pneg %p236
      $region38: #{tpu_custom_call.1} parent=5 // pred_check_branch
        %239 = sbr.rel (%p237) target = $region40
      $region39: #{tpu_custom_call.1} parent=5 // pred_region
        // Predicated region
        $region41: #{tpu_custom_call.1} parent=39 // pred_check
          %p240 = pneg %p34
        $region42: #{tpu_custom_call.1} parent=39 // pred_check_branch
          %242 = sbr.rel (%p240) target = $region44
        $region43: #{tpu_custom_call.1} parent=39 // pred_region
          %s243 = smul.u32 8, %s14
          %s244 = ssub.s32 25, %s243
          %p245 = scmp.lt.s32.totalorder %s244, 8
          %s246 = scalar_select %p245, %s244, 8
          %s247 = smul.u32 8, %s246
          %p248 = scmp.lt.s32.totalorder %s243, 24
          %s249 = scalar_select %p248, %s243, 24
          %s250 = smul.addr %s249, 8
          %s251 = scalar_lea.vmem %s0, %s250
          %s252 = smul.u32 8, %s14
          %s253 = ssub.s32 25, %s252
          %p254 = scmp.lt.s32.totalorder %s253, 8
          %s255 = scalar_select %p254, %s253, 8
          %s256 = smul.u32 8, %s255
        $region44: #{tpu_custom_call.1} parent=39 // pred_fallthru
          _
      $region40: #{tpu_custom_call.1} parent=5 // pred_fallthru
        _
      %p257 = scmp.le.s32.totalorder 1, %s14
      %p258 = scmp.lt.s32.totalorder %s14, 5
      %p259 = pnand %p257, %p258
      %p260 = pneg %p259
      // Predicated region
      $region45: #{tpu_custom_call.1} parent=5 // pred_check
        _
      $region46: #{tpu_custom_call.1} parent=5 // pred_check_branch
        %262 = sbr.rel (%p259) target = $region48
      $region47: #{tpu_custom_call.1} parent=5 // pred_region
        %s263 = ssub.s32 %s14, 1
        // Predicated region
        $region49: #{tpu_custom_call.1} parent=47 // pred_check
          %p264 = pneg %p145
        $region50: #{tpu_custom_call.1} parent=47 // pred_check_branch
          %266 = sbr.rel (%p264) target = $region52
        $region51: #{tpu_custom_call.1} parent=47 // pred_region
          %268 = dma.done [#allocation3], 2048
        $region52: #{tpu_custom_call.1} parent=47 // pred_fallthru
          _
        %s269 = smul.u32 8, %s19
        %s270 = ssub.s32 25, %s269
        %p271 = scmp.lt.s32.totalorder %s270, 8
        %s272 = scalar_select %p271, %s270, 8
        %s273 = smul.u32 8, %s272
        %p274 = scmp.lt.s32.totalorder %s269, 24
        %s275 = scalar_select %p274, %s269, 24
        %s276 = smul.addr %s275, 8
        %s277 = scalar_lea.vmem %s0, %s276
        %p278 = pneg %p40
        %p279 = pneg %p37
        %p280 = pneg %p61
        %p281 = pneg %p58
        %p282 = pneg %p82
        %p283 = pneg %p79
        %p284 = pneg %p103
        %p285 = pneg %p100
        %p286 = pneg %p124
        %p287 = pneg %p121
        %p288 = pneg %p145
        %p289 = pneg %p142
        %p290 = pneg %p166
        %p291 = pneg %p163
        %p292 = pneg %p192
        %p293 = pneg %p189
        %s294 = sand.u32 %s179, 1
        %s295 = sand.u32 %s179, 1
        %s296 = smul.addr %s295, 64
        %s297 = scalar_lea.vmem [#allocation4], %s296
        %s298 = smul.u32 8, %s19
        %s299 = ssub.s32 25, %s298
        %p300 = scmp.lt.s32.totalorder %s299, 8
        %s301 = scalar_select %p300, %s299, 8
        %s302 = smul.u32 8, %s301
        %p303 = scmp.lt.s32.totalorder %s298, 24
        %s304 = scalar_select %p303, %s298, 24
        %s305 = smul.addr %s304, 8
        %s306 = scalar_lea.vmem %s0, %s305
        %s307 = smul.u32 8, %s19
        %s308 = ssub.s32 25, %s307
        %p309 = scmp.lt.s32.totalorder %s308, 8
        %s310 = scalar_select %p309, %s308, 8
        %s311 = smul.u32 8, %s310
        %s312 = smul.u32 8, %s19
        %s313 = ssub.s32 25, %s312
        %p314 = scmp.lt.s32.totalorder %s313, 8
        %s315 = scalar_select %p314, %s313, 8
        %s316 = smul.u32 8, %s315
        %v317 = vld [vmem:[%s306] sm:$0xff]
        %v318 = vld [vmem:[%s306 + $0x8] sm:$0xff]
        %v319 = vld [vmem:[%s306 + $0x10] sm:$0xff]
        %v320 = vld [vmem:[%s306 + $0x18] sm:$0xff]
        %v321 = vld [vmem:[%s306 + $0x20] sm:$0xff]
        %v322 = vld [vmem:[%s306 + $0x28] sm:$0xff]
        %v323 = vld [vmem:[%s306 + $0x30] sm:$0xff]
        %v324 = vld [vmem:[%s306 + $0x38] sm:$0xff]
        %v325 = vld [vmem:[%s1] sm:$0xff]
        %v326 = vld [vmem:[%s1 + $0x8] sm:$0xff]
        %v327 = vld [vmem:[%s2] sm:$0x1]
        %v329 = vperm.slane %v327, 0
        %vm331 = vcmask 130048
        %v333 = vsel %vm331, %v317, 0
        %v336 = vsel %vm331, %v318, 0
        %v339 = vsel %vm331, %v319, 0
        %v342 = vsel %vm331, %v320, 0
        %v345 = vsel %vm331, %v321, 0
        %v348 = vsel %vm331, %v322, 0
        %v351 = vsel %vm331, %v323, 0
        %v354 = vsel %vm331, %v324, 0
        %356 = vmatpush.msra.mxu0 0.0
        %357 = vmatpush.msra.mxu0 0.0
        %358 = vmatpush.msra.mxu0 0.0
        %359 = vmatpush.msra.mxu0 0.0
        %360 = vmatpush.msra.mxu0 0.0
        %361 = vmatpush.msra.mxu0 0.0
        %362 = vmatpush.msra.mxu0 0.0
        %363 = vmatpush.msra.mxu0 0.0
        %364 = vmatpush.msra.mxu0 0.0
        %365 = vmatpush.msra.mxu0 0.0
        %366 = vmatpush.msra.mxu0 0.0
        %367 = vmatpush.msra.mxu0 0.0
        %368 = vmatpush.msra.mxu0 0.0
        %369 = vmatpush.msra.mxu0 0.0
        %370 = vmatpush.msra.mxu0 %v326
        %371 = vmatpush.msra.mxu0 %v325
        %372 = vmatmul.f32.gmra.mxu0 %v333
        %v373 = vpop.f32.mrf.mxu0
        %v374 = vadd.f32 %v329, %v373
        %375 = vmatmul.f32.gmra.mxu0 %v336
        %v376 = vpop.f32.mrf.mxu0
        %v377 = vadd.f32 %v329, %v376
        %378 = vmatmul.f32.gmra.mxu0 %v339
        %v379 = vpop.f32.mrf.mxu0
        %v380 = vadd.f32 %v329, %v379
        %381 = vmatmul.f32.gmra.mxu0 %v342
        %v382 = vpop.f32.mrf.mxu0
        %v383 = vadd.f32 %v329, %v382
        %384 = vmatmul.f32.gmra.mxu0 %v345
        %v385 = vpop.f32.mrf.mxu0
        %v386 = vadd.f32 %v329, %v385
        %387 = vmatmul.f32.gmra.mxu0 %v348
        %v388 = vpop.f32.mrf.mxu0
        %v389 = vadd.f32 %v329, %v388
        %390 = vmatmul.f32.gmra.mxu0 %v351
        %v391 = vpop.f32.mrf.mxu0
        %v392 = vadd.f32 %v329, %v391
        %393 = vmatmul.f32.gmra.mxu0 %v354
        %v394 = vpop.f32.mrf.mxu0
        %v395 = vadd.f32 %v329, %v394
        %396 = vdwg.mxu0
        %v397 = vmax.f32 %v374, 0.0
        %v398 = vmax.f32 %v377, 0.0
        %v399 = vmax.f32 %v380, 0.0
        %v400 = vmax.f32 %v383, 0.0
        %v401 = vmax.f32 %v386, 0.0
        %v402 = vmax.f32 %v389, 0.0
        %v403 = vmax.f32 %v392, 0.0
        %v404 = vmax.f32 %v395, 0.0
        %v405 = vld [vmem:[%s3] sm:$0xff]
        %v406 = vld [vmem:[%s3 + $0x8] sm:$0xff]
        %v407 = vld [vmem:[%s3 + $0x10] sm:$0xff]
        %v408 = vld [vmem:[%s3 + $0x18] sm:$0xff]
        %v409 = vld [vmem:[%s3 + $0x20] sm:$0xff]
        %v410 = vld [vmem:[%s3 + $0x28] sm:$0xff]
        %v411 = vld [vmem:[%s3 + $0x30] sm:$0xff]
        %v412 = vld [vmem:[%s3 + $0x38] sm:$0xff]
        %v413 = vld [vmem:[%s3 + $0x40] sm:$0xff]
        %v414 = vld [vmem:[%s3 + $0x48] sm:$0xff]
        %v415 = vld [vmem:[%s3 + $0x50] sm:$0xff]
        %v416 = vld [vmem:[%s3 + $0x58] sm:$0xff]
        %v417 = vld [vmem:[%s3 + $0x60] sm:$0xff]
        %v418 = vld [vmem:[%s3 + $0x68] sm:$0xff]
        %v419 = vld [vmem:[%s3 + $0x70] sm:$0xff]
        %v420 = vld [vmem:[%s3 + $0x78] sm:$0xff]
        %v421 = vld [vmem:[%s4] sm:$0x1]
        %v423 = vperm.slane %v421, 0
        %425 = vmatpush.msra.mxu0 %v420
        %426 = vmatpush.msra.mxu0 %v419
        %427 = vmatpush.msra.mxu0 %v418
        %428 = vmatpush.msra.mxu0 %v417
        %429 = vmatpush.msra.mxu0 %v416
        %430 = vmatpush.msra.mxu0 %v415
        %431 = vmatpush.msra.mxu0 %v414
        %432 = vmatpush.msra.mxu0 %v413
        %433 = vmatpush.msra.mxu0 %v412
        %434 = vmatpush.msra.mxu0 %v411
        %435 = vmatpush.msra.mxu0 %v410
        %436 = vmatpush.msra.mxu0 %v409
        %437 = vmatpush.msra.mxu0 %v408
        %438 = vmatpush.msra.mxu0 %v407
        %439 = vmatpush.msra.mxu0 %v406
        %440 = vmatpush.msra.mxu0 %v405
        %441 = vmatmul.f32.gmra.mxu0 %v397
        %v442 = vpop.f32.mrf.mxu0
        %v443 = vadd.f32 %v423, %v442
        %444 = vmatmul.f32.gmra.mxu0 %v398
        %v445 = vpop.f32.mrf.mxu0
        %v446 = vadd.f32 %v423, %v445
        %447 = vmatmul.f32.gmra.mxu0 %v399
        %v448 = vpop.f32.mrf.mxu0
        %v449 = vadd.f32 %v423, %v448
        %450 = vmatmul.f32.gmra.mxu0 %v400
        %v451 = vpop.f32.mrf.mxu0
        %v452 = vadd.f32 %v423, %v451
        %453 = vmatmul.f32.gmra.mxu0 %v401
        %v454 = vpop.f32.mrf.mxu0
        %v455 = vadd.f32 %v423, %v454
        %456 = vmatmul.f32.gmra.mxu0 %v402
        %v457 = vpop.f32.mrf.mxu0
        %v458 = vadd.f32 %v423, %v457
        %459 = vmatmul.f32.gmra.mxu0 %v403
        %v460 = vpop.f32.mrf.mxu0
        %v461 = vadd.f32 %v423, %v460
        %462 = vmatmul.f32.gmra.mxu0 %v404
        %v463 = vpop.f32.mrf.mxu0
        %v464 = vadd.f32 %v423, %v463
        %465 = vdwg.mxu0
        %v466 = vmax.f32 %v443, 0.0
        %v467 = vmax.f32 %v446, 0.0
        %v468 = vmax.f32 %v449, 0.0
        %v469 = vmax.f32 %v452, 0.0
        %v470 = vmax.f32 %v455, 0.0
        %v471 = vmax.f32 %v458, 0.0
        %v472 = vmax.f32 %v461, 0.0
        %v473 = vmax.f32 %v464, 0.0
        %v474 = vld [vmem:[#allocation2] sm:$0xff]
        %v475 = vld [vmem:[#allocation2 + $0x8] sm:$0xff]
        %v476 = vld [vmem:[#allocation2 + $0x10] sm:$0xff]
        %v477 = vld [vmem:[#allocation2 + $0x18] sm:$0xff]
        %v478 = vld [vmem:[#allocation2 + $0x20] sm:$0xff]
        %v479 = vld [vmem:[#allocation2 + $0x28] sm:$0xff]
        %v480 = vld [vmem:[#allocation2 + $0x30] sm:$0xff]
        %v481 = vld [vmem:[#allocation2 + $0x38] sm:$0xff]
        %v482 = vld [vmem:[#allocation2 + $0x40] sm:$0xff]
        %v483 = vld [vmem:[#allocation2 + $0x48] sm:$0xff]
        %v484 = vld [vmem:[#allocation2 + $0x50] sm:$0xff]
        %v485 = vld [vmem:[#allocation2 + $0x58] sm:$0xff]
        %v486 = vld [vmem:[#allocation2 + $0x60] sm:$0xff]
        %v487 = vld [vmem:[#allocation2 + $0x68] sm:$0xff]
        %v488 = vld [vmem:[#allocation2 + $0x70] sm:$0xff]
        %v489 = vld [vmem:[#allocation2 + $0x78] sm:$0xff]
        %v490 = vld [vmem:[%s6] sm:$0x1]
        %v492 = vperm.slane %v490, 0
        %494 = vmatpush.msra.mxu0 %v489
        %495 = vmatpush.msra.mxu0 %v488
        %496 = vmatpush.msra.mxu0 %v487
        %497 = vmatpush.msra.mxu0 %v486
        %498 = vmatpush.msra.mxu0 %v485
        %499 = vmatpush.msra.mxu0 %v484
        %500 = vmatpush.msra.mxu0 %v483
        %501 = vmatpush.msra.mxu0 %v482
        %502 = vmatpush.msra.mxu0 %v481
        %503 = vmatpush.msra.mxu0 %v480
        %504 = vmatpush.msra.mxu0 %v479
        %505 = vmatpush.msra.mxu0 %v478
        %506 = vmatpush.msra.mxu0 %v477
        %507 = vmatpush.msra.mxu0 %v476
        %508 = vmatpush.msra.mxu0 %v475
        %509 = vmatpush.msra.mxu0 %v474
        %510 = vmatmul.f32.gmra.mxu0 %v466
        %v511 = vpop.f32.mrf.mxu0
        %v512 = vadd.f32 %v492, %v511
        %513 = vmatmul.f32.gmra.mxu0 %v467
        %v514 = vpop.f32.mrf.mxu0
        %v515 = vadd.f32 %v492, %v514
        %516 = vmatmul.f32.gmra.mxu0 %v468
        %v517 = vpop.f32.mrf.mxu0
        %v518 = vadd.f32 %v492, %v517
        %519 = vmatmul.f32.gmra.mxu0 %v469
        %v520 = vpop.f32.mrf.mxu0
        %v521 = vadd.f32 %v492, %v520
        %522 = vmatmul.f32.gmra.mxu0 %v470
        %v523 = vpop.f32.mrf.mxu0
        %v524 = vadd.f32 %v492, %v523
        %525 = vmatmul.f32.gmra.mxu0 %v471
        %v526 = vpop.f32.mrf.mxu0
        %v527 = vadd.f32 %v492, %v526
        %528 = vmatmul.f32.gmra.mxu0 %v472
        %v529 = vpop.f32.mrf.mxu0
        %v530 = vadd.f32 %v492, %v529
        %531 = vmatmul.f32.gmra.mxu0 %v473
        %v532 = vpop.f32.mrf.mxu0
        %v533 = vadd.f32 %v492, %v532
        %534 = vdwg.mxu0
        %535 = vadd.xlane.f32.xlu0 %v512
        %v536 = vpop.xlane.xlu0 %535
        %537 = vadd.xlane.f32.xlu0 %v515
        %v538 = vpop.xlane.xlu0 %537
        %539 = vadd.xlane.f32.xlu0 %v518
        %v540 = vpop.xlane.xlu0 %539
        %541 = vadd.xlane.f32.xlu0 %v521
        %v542 = vpop.xlane.xlu0 %541
        %543 = vadd.xlane.f32.xlu0 %v524
        %v544 = vpop.xlane.xlu0 %543
        %545 = vadd.xlane.f32.xlu0 %v527
        %v546 = vpop.xlane.xlu0 %545
        %547 = vadd.xlane.f32.xlu0 %v530
        %v548 = vpop.xlane.xlu0 %547
        %549 = vadd.xlane.f32.xlu0 %v533
        %v550 = vpop.xlane.xlu0 %549
        %v551 = vsub.f32 %v536, %v512
        %v552 = vsub.f32 %v538, %v515
        %v553 = vsub.f32 %v540, %v518
        %v554 = vsub.f32 %v542, %v521
        %v555 = vsub.f32 %v544, %v524
        %v556 = vsub.f32 %v546, %v527
        %v557 = vsub.f32 %v548, %v530
        %v558 = vsub.f32 %v550, %v533
        %v559 = vmul.f32 %v551, 0.25
        %v560 = vmul.f32 %v552, 0.25
        %v561 = vmul.f32 %v553, 0.25
        %v562 = vmul.f32 %v554, 0.25
        %v563 = vmul.f32 %v555, 0.25
        %v564 = vmul.f32 %v556, 0.25
        %v565 = vmul.f32 %v557, 0.25
        %v566 = vmul.f32 %v558, 0.25
        %568 = vset.pattern.permute.xlu0 4
        %569 = vperm.xlu0 %568, %v512
        %v570 = vpop.permute.xlu0 %569
        %573 = vset.pattern.permute.xlu0 4
        %574 = vperm.xlu0 %573, %v515
        %v575 = vpop.permute.xlu0 %574
        %578 = vset.pattern.permute.xlu0 4
        %579 = vperm.xlu0 %578, %v518
        %v580 = vpop.permute.xlu0 %579
        %583 = vset.pattern.permute.xlu0 4
        %584 = vperm.xlu0 %583, %v521
        %v585 = vpop.permute.xlu0 %584
        %588 = vset.pattern.permute.xlu0 4
        %589 = vperm.xlu0 %588, %v524
        %v590 = vpop.permute.xlu0 %589
        %593 = vset.pattern.permute.xlu0 4
        %594 = vperm.xlu0 %593, %v527
        %v595 = vpop.permute.xlu0 %594
        %598 = vset.pattern.permute.xlu0 4
        %599 = vperm.xlu0 %598, %v530
        %v600 = vpop.permute.xlu0 %599
        %603 = vset.pattern.permute.xlu0 4
        %604 = vperm.xlu0 %603, %v533
        %v605 = vpop.permute.xlu0 %604
        %v607 = vadd.f32 %v570, %v512
        %v608 = vadd.f32 %v575, %v515
        %v609 = vadd.f32 %v580, %v518
        %v610 = vadd.f32 %v585, %v521
        %v611 = vadd.f32 %v590, %v524
        %v612 = vadd.f32 %v595, %v527
        %v613 = vadd.f32 %v600, %v530
        %v614 = vadd.f32 %v605, %v533
        %616 = vset.pattern.permute.xlu0 4
        %617 = vperm.xlu0 %616, %v559
        %v618 = vpop.permute.xlu0 %617
        %621 = vset.pattern.permute.xlu0 4
        %622 = vperm.xlu0 %621, %v560
        %v623 = vpop.permute.xlu0 %622
        %626 = vset.pattern.permute.xlu0 4
        %627 = vperm.xlu0 %626, %v561
        %v628 = vpop.permute.xlu0 %627
        %631 = vset.pattern.permute.xlu0 4
        %632 = vperm.xlu0 %631, %v562
        %v633 = vpop.permute.xlu0 %632
        %636 = vset.pattern.permute.xlu0 4
        %637 = vperm.xlu0 %636, %v563
        %v638 = vpop.permute.xlu0 %637
        %641 = vset.pattern.permute.xlu0 4
        %642 = vperm.xlu0 %641, %v564
        %v643 = vpop.permute.xlu0 %642
        %646 = vset.pattern.permute.xlu0 4
        %647 = vperm.xlu0 %646, %v565
        %v648 = vpop.permute.xlu0 %647
        %651 = vset.pattern.permute.xlu0 4
        %652 = vperm.xlu0 %651, %v566
        %v653 = vpop.permute.xlu0 %652
        %v655 = vsub.f32 %v607, %v618
        %v656 = vsub.f32 %v608, %v623
        %v657 = vsub.f32 %v609, %v628
        %v658 = vsub.f32 %v610, %v633
        %v659 = vsub.f32 %v611, %v638
        %v660 = vsub.f32 %v612, %v643
        %v661 = vsub.f32 %v613, %v648
        %v662 = vsub.f32 %v614, %v653
        %vm663 = vcmask 31744
        %664 = vst.msk [vmem:[%s297] sm:$0xff] %vm663, %v655
        %665 = vst.msk [vmem:[%s297 + $0x8] sm:$0xff] %vm663, %v656
        %666 = vst.msk [vmem:[%s297 + $0x10] sm:$0xff] %vm663, %v657
        %667 = vst.msk [vmem:[%s297 + $0x18] sm:$0xff] %vm663, %v658
        %668 = vst.msk [vmem:[%s297 + $0x20] sm:$0xff] %vm663, %v659
        %669 = vst.msk [vmem:[%s297 + $0x28] sm:$0xff] %vm663, %v660
        %670 = vst.msk [vmem:[%s297 + $0x30] sm:$0xff] %vm663, %v661
        %671 = vst.msk [vmem:[%s297 + $0x38] sm:$0xff] %vm663, %v662
        %s672 = sand.u32 %s179, 1
        %s673 = sand.u32 %s179, 1
        %s674 = smul.addr %s673, 64
        %s675 = scalar_lea.vmem [#allocation4], %s674
        // Predicated region
        $region53: #{tpu_custom_call.1} parent=47 // pred_check
          %p676 = pneg %p189
        $region54: #{tpu_custom_call.1} parent=47 // pred_check_branch
          %678 = sbr.rel (%p676) target = $region56
        $region55: #{tpu_custom_call.1} parent=47 // pred_region
          %s679 = smul.u32 8, %s19
          %s680 = ssub.s32 25, %s679
          %p681 = scmp.lt.s32.totalorder %s680, 8
          %s682 = scalar_select %p681, %s680, 8
          %s683 = smul.u32 8, %s682
          %p684 = scmp.ne.s32.totalorder 0, %s683
          %s685 = smul.addr %s679, 8
          %s686 = scalar_lea.vmem %s7, %s685
          // Predicated region
          $region57: #{tpu_custom_call.1} parent=55 // pred_check
            %p687 = pneg %p684
          $region58: #{tpu_custom_call.1} parent=55 // pred_check_branch
            %689 = sbr.rel (%p687) target = $region60
          $region59: #{tpu_custom_call.1} parent=55 // pred_region
            // Predicated region
            $region61: #{tpu_custom_call.1} parent=59 // pred_check
              _
            $region62: #{tpu_custom_call.1} parent=59 // pred_check_branch
              %691 = sbr.rel (0) target = $region64
            $region63: #{tpu_custom_call.1} parent=59 // pred_region
              // Predicated region
              $region83: #{tpu_custom_call.1} parent=63 // pred_check
                _
              $region84: #{tpu_custom_call.1} parent=63 // pred_check_branch
                %755 = sbr.rel (0) target = $region86
              $region85: #{tpu_custom_call.1} parent=63 // pred_region
                %s756 = sshrl.u32 %s682, 3
                // While loop
                $region87: #{tpu_custom_call.1} parent=85 // loop_pre_header
                  _
                $region88: #{tpu_custom_call.1} parent=85 // loop_header
                  %s758 = sphi 0, %s760
                  %p759 = scmp.ge.s32.totalorder %s758, %s756
                  %s763 = sphi 0, %s784
                  %s764 = sphi %s675, %s787
                  %s765 = sphi %s686, %s788
                $region89: #{tpu_custom_call.1} parent=85 // loop_header_branch
                  %762 = sbr.rel (%p759) target = $region93
                $region90: #{tpu_custom_call.1} parent=85 // loop_body
                  %v766 = vld [vmem:[%s764] sm:$0xff]
                  %767 = vst [vmem:[%s765] sm:$0xff] %v766
                  %v768 = vld [vmem:[%s764 + $0x8] sm:$0xff]
                  %769 = vst [vmem:[%s765 + $0x8] sm:$0xff] %v768
                  %v770 = vld [vmem:[%s764 + $0x10] sm:$0xff]
                  %771 = vst [vmem:[%s765 + $0x10] sm:$0xff] %v770
                  %v772 = vld [vmem:[%s764 + $0x18] sm:$0xff]
                  %773 = vst [vmem:[%s765 + $0x18] sm:$0xff] %v772
                  %v774 = vld [vmem:[%s764 + $0x20] sm:$0xff]
                  %775 = vst [vmem:[%s765 + $0x20] sm:$0xff] %v774
                  %v776 = vld [vmem:[%s764 + $0x28] sm:$0xff]
                  %777 = vst [vmem:[%s765 + $0x28] sm:$0xff] %v776
                  %v778 = vld [vmem:[%s764 + $0x30] sm:$0xff]
                  %779 = vst [vmem:[%s765 + $0x30] sm:$0xff] %v778
                  %v780 = vld [vmem:[%s764 + $0x38] sm:$0xff]
                  %781 = vst [vmem:[%s765 + $0x38] sm:$0xff] %v780
                  %s782 = sadd.s32 1, %s763
                  %p783 = scmp.ge.s32.totalorder %s782, %s756
                  %s784 = scalar_select %p783, 0, %s782
                  %s785 = smul.u32 %s784, 64
                  %s786 = smul.u32 %s784, 64
                  %s787 = scalar_lea.vmem %s675, %s785 [#allocation4]
                  %s788 = scalar_lea.vmem %s686, %s786
                $region91: #{tpu_custom_call.1} parent=85 // loop_footer
                  %s760 = sadd.s32 %s758, 1
                $region92: #{tpu_custom_call.1} parent=85 // loop_footer_branch
                  %757 = sbr.rel target = $region88
                $region93: #{tpu_custom_call.1} parent=85 // loop_exit
                  _
                %s789 = sshrl.u32 %s682, 3
                %s790 = sand.u32 %s682, 7
                %s791 = smul.u32 %s789, 8
                %s792 = smul.u32 8, %s791
                %s793 = scalar_lea.vmem %s675, %s792 [#allocation4]
                %s794 = smul.u32 8, %s791
                %s795 = scalar_lea.vmem %s686, %s794
                // While loop
                $region94: #{tpu_custom_call.1} parent=85 // loop_pre_header
                  _
                $region95: #{tpu_custom_call.1} parent=85 // loop_header
                  %s797 = sphi 0, %s799
                  %p798 = scmp.ge.s32.totalorder %s797, %s790
                  %s802 = sphi 0, %s809
                  %s803 = sphi %s793, %s812
                  %s804 = sphi %s795, %s813
                $region96: #{tpu_custom_call.1} parent=85 // loop_header_branch
                  %801 = sbr.rel (%p798) target = $region100
                $region97: #{tpu_custom_call.1} parent=85 // loop_body
                  %v805 = vld [vmem:[%s803] sm:$0xff]
                  %806 = vst [vmem:[%s804] sm:$0xff] %v805
                  %s807 = sadd.s32 1, %s802
                  %p808 = scmp.ge.s32.totalorder %s807, %s790
                  %s809 = scalar_select %p808, 0, %s807
                  %s810 = smul.u32 %s809, 8
                  %s811 = smul.u32 %s809, 8
                  %s812 = scalar_lea.vmem %s793, %s810 [#allocation4]
                  %s813 = scalar_lea.vmem %s795, %s811
                $region98: #{tpu_custom_call.1} parent=85 // loop_footer
                  %s799 = sadd.s32 %s797, 1
                $region99: #{tpu_custom_call.1} parent=85 // loop_footer_branch
                  %796 = sbr.rel target = $region95
                $region100: #{tpu_custom_call.1} parent=85 // loop_exit
                  _
              $region86: #{tpu_custom_call.1} parent=63 // pred_fallthru
                _
              // Predicated region
              $region101: #{tpu_custom_call.1} parent=63 // pred_check
                _
              $region102: #{tpu_custom_call.1} parent=63 // pred_check_branch
                %815 = sbr.rel target = $region104
              $region103: #{tpu_custom_call.1} parent=63 // pred_region
                _
              $region104: #{tpu_custom_call.1} parent=63 // pred_fallthru
                _
            $region64: #{tpu_custom_call.1} parent=59 // pred_fallthru
              _
            // Predicated region
            $region65: #{tpu_custom_call.1} parent=59 // pred_check
              _
            $region66: #{tpu_custom_call.1} parent=59 // pred_check_branch
              %693 = sbr.rel target = $region68
            $region67: #{tpu_custom_call.1} parent=59 // pred_region
              %s695 = ssub.s32 256, 1
              %s696 = sshrl.u32 %s682, 3
              // While loop
              $region69: #{tpu_custom_call.1} parent=67 // loop_pre_header
                _
              $region70: #{tpu_custom_call.1} parent=67 // loop_header
                %s698 = sphi 0, %s700
                %p699 = scmp.ge.s32.totalorder %s698, %s696
                %s703 = sphi 0, %s724
                %s704 = sphi %s675, %s727
                %s705 = sphi %s686, %s728
              $region71: #{tpu_custom_call.1} parent=67 // loop_header_branch
                %702 = sbr.rel (%p699) target = $region75
              $region72: #{tpu_custom_call.1} parent=67 // loop_body
                %v706 = vld [vmem:[%s704] sm:%s695]
                %707 = vst [vmem:[%s705] sm:%s695] %v706
                %v708 = vld [vmem:[%s704 + $0x8] sm:%s695]
                %709 = vst [vmem:[%s705 + $0x8] sm:%s695] %v708
                %v710 = vld [vmem:[%s704 + $0x10] sm:%s695]
                %711 = vst [vmem:[%s705 + $0x10] sm:%s695] %v710
                %v712 = vld [vmem:[%s704 + $0x18] sm:%s695]
                %713 = vst [vmem:[%s705 + $0x18] sm:%s695] %v712
                %v714 = vld [vmem:[%s704 + $0x20] sm:%s695]
                %715 = vst [vmem:[%s705 + $0x20] sm:%s695] %v714
                %v716 = vld [vmem:[%s704 + $0x28] sm:%s695]
                %717 = vst [vmem:[%s705 + $0x28] sm:%s695] %v716
                %v718 = vld [vmem:[%s704 + $0x30] sm:%s695]
                %719 = vst [vmem:[%s705 + $0x30] sm:%s695] %v718
                %v720 = vld [vmem:[%s704 + $0x38] sm:%s695]
                %721 = vst [vmem:[%s705 + $0x38] sm:%s695] %v720
                %s722 = sadd.s32 1, %s703
                %p723 = scmp.ge.s32.totalorder %s722, %s696
                %s724 = scalar_select %p723, 0, %s722
                %s725 = smul.u32 %s724, 64
                %s726 = smul.u32 %s724, 64
                %s727 = scalar_lea.vmem %s675, %s725 [#allocation4]
                %s728 = scalar_lea.vmem %s686, %s726
              $region73: #{tpu_custom_call.1} parent=67 // loop_footer
                %s700 = sadd.s32 %s698, 1
              $region74: #{tpu_custom_call.1} parent=67 // loop_footer_branch
                %697 = sbr.rel target = $region70
              $region75: #{tpu_custom_call.1} parent=67 // loop_exit
                _
              %s729 = sshrl.u32 %s682, 3
              %s730 = sand.u32 %s682, 7
              %s731 = smul.u32 %s729, 8
              %s732 = smul.u32 8, %s731
              %s733 = scalar_lea.vmem %s675, %s732 [#allocation4]
              %s734 = smul.u32 8, %s731
              %s735 = scalar_lea.vmem %s686, %s734
              // While loop
              $region76: #{tpu_custom_call.1} parent=67 // loop_pre_header
                _
              $region77: #{tpu_custom_call.1} parent=67 // loop_header
                %s737 = sphi 0, %s739
                %p738 = scmp.ge.s32.totalorder %s737, %s730
                %s742 = sphi 0, %s749
                %s743 = sphi %s733, %s752
                %s744 = sphi %s735, %s753
              $region78: #{tpu_custom_call.1} parent=67 // loop_header_branch
                %741 = sbr.rel (%p738) target = $region82
              $region79: #{tpu_custom_call.1} parent=67 // loop_body
                %v745 = vld [vmem:[%s743] sm:%s695]
                %746 = vst [vmem:[%s744] sm:%s695] %v745
                %s747 = sadd.s32 1, %s742
                %p748 = scmp.ge.s32.totalorder %s747, %s730
                %s749 = scalar_select %p748, 0, %s747
                %s750 = smul.u32 %s749, 8
                %s751 = smul.u32 %s749, 8
                %s752 = scalar_lea.vmem %s733, %s750 [#allocation4]
                %s753 = scalar_lea.vmem %s735, %s751
              $region80: #{tpu_custom_call.1} parent=67 // loop_footer
                %s739 = sadd.s32 %s737, 1
              $region81: #{tpu_custom_call.1} parent=67 // loop_footer_branch
                %736 = sbr.rel target = $region77
              $region82: #{tpu_custom_call.1} parent=67 // loop_exit
                _
            $region68: #{tpu_custom_call.1} parent=59 // pred_fallthru
              _
          $region60: #{tpu_custom_call.1} parent=55 // pred_fallthru
            _
          %816 = vnop
        $region56: #{tpu_custom_call.1} parent=47 // pred_fallthru
          _
      $region48: #{tpu_custom_call.1} parent=5 // pred_fallthru
        _
      %p817 = scmp.le.s32.totalorder 2, %s14
      // Predicated region
      $region105: #{tpu_custom_call.1} parent=5 // pred_check
        %p818 = pneg %p817
      $region106: #{tpu_custom_call.1} parent=5 // pred_check_branch
        %820 = sbr.rel (%p818) target = $region108
      $region107: #{tpu_custom_call.1} parent=5 // pred_region
        %s821 = ssub.s32 %s14, 2
        // Predicated region
        $region109: #{tpu_custom_call.1} parent=107 // pred_check
          %p822 = pneg %p195
        $region110: #{tpu_custom_call.1} parent=107 // pred_check_branch
          %824 = sbr.rel (%p822) target = $region112
        $region111: #{tpu_custom_call.1} parent=107 // pred_region
          %s825 = sand.u32 %s180, 1
          %s826 = sand.u32 %s180, 1
          %s827 = smul.addr %s826, 64
          %s828 = scalar_lea.vmem [#allocation4], %s827
        $region112: #{tpu_custom_call.1} parent=107 // pred_fallthru
          _
      $region108: #{tpu_custom_call.1} parent=5 // pred_fallthru
        _
    $region6: #{tpu_custom_call.1} parent=1 // loop_footer
      %s18 = sadd.s32 1, %s14
    $region7: #{tpu_custom_call.1} parent=1 // loop_footer_branch
      %13 = sbr.rel target = $region3
    $region8: #{tpu_custom_call.1} parent=1 // loop_exit
      _
    %829 = vsyncpa [#allocation3], 1
    %s830 = scalar_lea.sflag [#allocation3], 1
    %831 = vsyncpa %s830, 1

</llo_original>
